<compile_context>
chip_gen: v6e
topology: v6e:2x2x1
jax: 0.10.0
libtpu: 0.0.40
codegen_flags: <defaults>
</compile_context>

<pallas_src>
import jax
import jax.numpy as jnp
from jax.experimental import pallas as pl
from jax.experimental.pallas import tpu as pltpu

# mynet layer dims of gpnet1_1_2.
LAYER_DIMS = [(1, 20), (20, 8), (8, 2), (2, 1)]

XPAD = 8       # input feature width: real 1, padded to 8 (narrow I/O block)
HPAD = 128     # hidden feature width: padded to 128 (lane-dense vregs)
OPAD = 8       # output feature width: real 1, padded to 8 (narrow I/O block)
TM_MAX = 512   # rows per grid step; fits default scoped VMEM on v5e/v6e/v7x


def _round_up(x, m):
    return ((x + m - 1) // m) * m


def _mlp_kernel(x_ref, w1, b1, w2, b2, w3, b3, w4, b4, o_ref):
    """All 4 Linear layers (+Tanh on the first 3) fused; one (TM, 8) row tile per step."""
    h = x_ref[...]                                                                      # (TM, 8)
    h = jnp.tanh(jnp.dot(h, w1[...], preferred_element_type=jnp.float32) + b1[...])    # (TM, 128)
    h = jnp.tanh(jnp.dot(h, w2[...], preferred_element_type=jnp.float32) + b2[...])    # (TM, 128)
    h = jnp.tanh(jnp.dot(h, w3[...], preferred_element_type=jnp.float32) + b3[...])    # (TM, 128)
    h = jnp.dot(h, w4[...], preferred_element_type=jnp.float32) + b4[...]              # (TM, 8)
    o_ref[...] = h.astype(o_ref.dtype)


def init_params(key):
    """Deterministic PyTorch-style Linear init: U(-1/sqrt(fan_in), +1/sqrt(fan_in))."""
    params = []
    for (fan_in, fan_out) in LAYER_DIMS:
        key, kw, kb = jax.random.split(key, 3)
        bound = 1.0 / jnp.sqrt(jnp.float32(fan_in))
        w = jax.random.uniform(kw, (fan_in, fan_out), jnp.float32, -bound, bound)
        b = jax.random.uniform(kb, (fan_out,), jnp.float32, -bound, bound)
        params.append((w, b))
    return params


def _pad_params(params):
    """Zero-pad weights/biases to the kernel's padded shapes (zero padding is inert)."""
    # Padded (K, N) shapes per layer: (8,128), (128,128), (128,128), (128,8)
    w_shapes = [(XPAD, HPAD), (HPAD, HPAD), (HPAD, HPAD), (HPAD, OPAD)]
    b_shapes = [(1, HPAD), (1, HPAD), (1, HPAD), (1, OPAD)]
    flat = []
    for (w, b), ws, bs in zip(params, w_shapes, b_shapes):
        wp = jnp.zeros(ws, jnp.float32).at[: w.shape[0], : w.shape[1]].set(w)
        bp = jnp.zeros(bs, jnp.float32).at[0, : b.shape[0]].set(b)
        flat.append(wp)
        flat.append(bp)
    return flat


@jax.jit
def gpnet1_1_2_forward(x_train, *flat_padded_params):
    """Equivalent of gpnet1_1_2.forward(x_train=x_train) -> self.mynet(x_train)."""
    n = x_train.shape[0]
    tm = min(TM_MAX, _round_up(n, 8))      # sublane-aligned row tile
    n_pad = _round_up(n, tm)

    # Pad rows to a tile multiple and features to width 8 only (narrow I/O).
    x_pad = jnp.zeros((n_pad, XPAD), jnp.float32)
    x_pad = x_pad.at[:n, : x_train.shape[1]].set(x_train.astype(jnp.float32))

    grid = (n_pad // tm,)
    const = lambda i: (0, 0)
    in_specs = [
        pl.BlockSpec((tm, XPAD), lambda i: (i, 0)),   # x row tile
        pl.BlockSpec((XPAD, HPAD), const),            # w1
        pl.BlockSpec((1, HPAD), const),               # b1
        pl.BlockSpec((HPAD, HPAD), const),            # w2
        pl.BlockSpec((1, HPAD), const),               # b2
        pl.BlockSpec((HPAD, HPAD), const),            # w3
        pl.BlockSpec((1, HPAD), const),               # b3
        pl.BlockSpec((HPAD, OPAD), const),            # w4
        pl.BlockSpec((1, OPAD), const),               # b4
    ]

    out = pl.pallas_call(
        _mlp_kernel,
        out_shape=jax.ShapeDtypeStruct((n_pad, OPAD), jnp.float32),
        grid_spec=pltpu.PrefetchScalarGridSpec(
            num_scalar_prefetch=0,
            grid=grid,
            in_specs=in_specs,
            out_specs=pl.BlockSpec((tm, OPAD), lambda i: (i, 0)),
        ),
        compiler_params=pltpu.CompilerParams(
            dimension_semantics=("parallel",),
        ),
    )(x_pad, *flat_padded_params)

    # Strip padding: real output is (N, 1).
    return out[:n, :1]


def reference_forward(x_train, params):
    """Pure-JAX reference of the same MLP (sanity check)."""
    h = x_train.astype(jnp.float32)
    for li, (w, b) in enumerate(params):
        h = h @ w + b
        if li < len(params) - 1:            # final Linear(2,1) has no Tanh
            h = jnp.tanh(h)
    return h


if __name__ == "__main__":
    key = jax.random.PRNGKey(0)
    kparam, kx = jax.random.split(key)

    params = init_params(kparam)
    flat_padded = _pad_params(params)

    # Small example consistent with the module: x_train has 1 input feature.
    N = 100
    x_train = jax.random.normal(kx, (N, 1), jnp.float32)

    out = gpnet1_1_2_forward(x_train, *flat_padded)
    out = jax.block_until_ready(out)

    ref = reference_forward(x_train, params)
    assert out.shape == (N, 1), out.shape
    assert jnp.allclose(out, ref, atol=1e-5, rtol=1e-5), float(jnp.max(jnp.abs(out - ref)))

    print("KERNEL_OK")
</pallas_src>

<mosaic_0001>
module attributes {stable_mosaic.version = 11 : i64} {
  func.func @_mlp_kernel(%arg0: i32, %arg1: memref<104x8xf32, #tpu.memory_space<vmem>>, %arg2: memref<8x128xf32, #tpu.memory_space<vmem>>, %arg3: memref<1x128xf32, #tpu.memory_space<vmem>>, %arg4: memref<128x128xf32, #tpu.memory_space<vmem>>, %arg5: memref<1x128xf32, #tpu.memory_space<vmem>>, %arg6: memref<128x128xf32, #tpu.memory_space<vmem>>, %arg7: memref<1x128xf32, #tpu.memory_space<vmem>>, %arg8: memref<128x8xf32, #tpu.memory_space<vmem>>, %arg9: memref<1x8xf32, #tpu.memory_space<vmem>>, %arg10: memref<104x8xf32, #tpu.memory_space<vmem>>) attributes {dimension_semantics = [#tpu.dimension_semantics<parallel>], iteration_bounds = array<i64: 1>, scalar_prefetch = 0 : i64, scratch_operands = 0 : i64, tpu.core_type = #tpu.core_type<tc>, window_params = [{transform_indices = @transform_0, window_bounds = array<i64: 104, 8>}, {pipeline_mode = #tpu.pipeline_mode<synchronous>, transform_indices = @transform_1, window_bounds = array<i64: 8, 128>}, {pipeline_mode = #tpu.pipeline_mode<synchronous>, transform_indices = @transform_2, window_bounds = array<i64: 1, 128>}, {pipeline_mode = #tpu.pipeline_mode<synchronous>, transform_indices = @transform_3, window_bounds = array<i64: 128, 128>}, {pipeline_mode = #tpu.pipeline_mode<synchronous>, transform_indices = @transform_4, window_bounds = array<i64: 1, 128>}, {pipeline_mode = #tpu.pipeline_mode<synchronous>, transform_indices = @transform_5, window_bounds = array<i64: 128, 128>}, {pipeline_mode = #tpu.pipeline_mode<synchronous>, transform_indices = @transform_6, window_bounds = array<i64: 1, 128>}, {pipeline_mode = #tpu.pipeline_mode<synchronous>, transform_indices = @transform_7, window_bounds = array<i64: 128, 8>}, {pipeline_mode = #tpu.pipeline_mode<synchronous>, transform_indices = @transform_8, window_bounds = array<i64: 1, 8>}, {transform_indices = @transform_9, window_bounds = array<i64: 104, 8>}]} {
    %c0 = arith.constant 0 : index
    %c0_0 = arith.constant 0 : index
    %0 = vector.load %arg1[%c0, %c0_0] : memref<104x8xf32, #tpu.memory_space<vmem>>, vector<104x8xf32>
    %c0_1 = arith.constant 0 : index
    %c0_2 = arith.constant 0 : index
    %1 = vector.load %arg2[%c0_1, %c0_2] : memref<8x128xf32, #tpu.memory_space<vmem>>, vector<8x128xf32>
    %cst = arith.constant dense<0.000000e+00> : vector<104x128xf32>
    %2 = tpu.matmul %0, %1, %cst {dimension_numbers = #tpu.dot_dimension_numbers<[1], [0], [0], [1], [0, 0, 1, 1], [], []>} : vector<104x8xf32>, vector<8x128xf32>, vector<104x128xf32> -> vector<104x128xf32>
    %c0_3 = arith.constant 0 : index
    %c0_4 = arith.constant 0 : index
    %3 = vector.load %arg3[%c0_3, %c0_4] : memref<1x128xf32, #tpu.memory_space<vmem>>, vector<1x128xf32>
    %4 = vector.broadcast %3 : vector<1x128xf32> to vector<104x128xf32>
    %5 = arith.addf %2, %4 : vector<104x128xf32>
    %6 = math.tanh %5 : vector<104x128xf32>
    %c0_5 = arith.constant 0 : index
    %c0_6 = arith.constant 0 : index
    %7 = vector.load %arg4[%c0_5, %c0_6] : memref<128x128xf32, #tpu.memory_space<vmem>>, vector<128x128xf32>
    %cst_7 = arith.constant dense<0.000000e+00> : vector<104x128xf32>
    %8 = tpu.matmul %6, %7, %cst_7 {dimension_numbers = #tpu.dot_dimension_numbers<[1], [0], [0], [1], [0, 0, 1, 1], [], []>} : vector<104x128xf32>, vector<128x128xf32>, vector<104x128xf32> -> vector<104x128xf32>
    %c0_8 = arith.constant 0 : index
    %c0_9 = arith.constant 0 : index
    %9 = vector.load %arg5[%c0_8, %c0_9] : memref<1x128xf32, #tpu.memory_space<vmem>>, vector<1x128xf32>
    %10 = vector.broadcast %9 : vector<1x128xf32> to vector<104x128xf32>
    %11 = arith.addf %8, %10 : vector<104x128xf32>
    %12 = math.tanh %11 : vector<104x128xf32>
    %c0_10 = arith.constant 0 : index
    %c0_11 = arith.constant 0 : index
    %13 = vector.load %arg6[%c0_10, %c0_11] : memref<128x128xf32, #tpu.memory_space<vmem>>, vector<128x128xf32>
    %cst_12 = arith.constant dense<0.000000e+00> : vector<104x128xf32>
    %14 = tpu.matmul %12, %13, %cst_12 {dimension_numbers = #tpu.dot_dimension_numbers<[1], [0], [0], [1], [0, 0, 1, 1], [], []>} : vector<104x128xf32>, vector<128x128xf32>, vector<104x128xf32> -> vector<104x128xf32>
    %c0_13 = arith.constant 0 : index
    %c0_14 = arith.constant 0 : index
    %15 = vector.load %arg7[%c0_13, %c0_14] : memref<1x128xf32, #tpu.memory_space<vmem>>, vector<1x128xf32>
    %16 = vector.broadcast %15 : vector<1x128xf32> to vector<104x128xf32>
    %17 = arith.addf %14, %16 : vector<104x128xf32>
    %18 = math.tanh %17 : vector<104x128xf32>
    %c0_15 = arith.constant 0 : index
    %c0_16 = arith.constant 0 : index
    %19 = vector.load %arg8[%c0_15, %c0_16] : memref<128x8xf32, #tpu.memory_space<vmem>>, vector<128x8xf32>
    %cst_17 = arith.constant dense<0.000000e+00> : vector<104x8xf32>
    %20 = tpu.matmul %18, %19, %cst_17 {dimension_numbers = #tpu.dot_dimension_numbers<[1], [0], [0], [1], [0, 0, 1, 1], [], []>} : vector<104x128xf32>, vector<128x8xf32>, vector<104x8xf32> -> vector<104x8xf32>
    %c0_18 = arith.constant 0 : index
    %c0_19 = arith.constant 0 : index
    %21 = vector.load %arg9[%c0_18, %c0_19] : memref<1x8xf32, #tpu.memory_space<vmem>>, vector<1x8xf32>
    %22 = vector.broadcast %21 : vector<1x8xf32> to vector<104x8xf32>
    %23 = arith.addf %20, %22 : vector<104x8xf32>
    %c0_20 = arith.constant 0 : index
    %c0_21 = arith.constant 0 : index
    %24 = vector.load %arg10[%c0_20, %c0_21] : memref<104x8xf32, #tpu.memory_space<vmem>>, vector<104x8xf32>
    tpu.vector_store %arg10[%c0_20, %c0_21], %23 {strides = array<i32>} : memref<104x8xf32, #tpu.memory_space<vmem>>, vector<104x8xf32>,
    return
  }
  func.func @transform_0(%arg0: i32) -> (i32, i32) {
    %c0_i32 = arith.constant 0 : i32
    %c0_i32_0 = arith.constant 0 : i32
    return %arg0, %c0_i32 : i32, i32
  }
  func.func @transform_1(%arg0: i32) -> (i32, i32) {
    %c0_i32 = arith.constant 0 : i32
    %c0_i32_0 = arith.constant 0 : i32
    %c0_i32_1 = arith.constant 0 : i32
    return %c0_i32, %c0_i32_0 : i32, i32
  }
  func.func @transform_2(%arg0: i32) -> (i32, i32) {
    %c0_i32 = arith.constant 0 : i32
    %c0_i32_0 = arith.constant 0 : i32
    %c0_i32_1 = arith.constant 0 : i32
    return %c0_i32, %c0_i32_0 : i32, i32
  }
  func.func @transform_3(%arg0: i32) -> (i32, i32) {
    %c0_i32 = arith.constant 0 : i32
    %c0_i32_0 = arith.constant 0 : i32
    %c0_i32_1 = arith.constant 0 : i32
    return %c0_i32, %c0_i32_0 : i32, i32
  }
  func.func @transform_4(%arg0: i32) -> (i32, i32) {
    %c0_i32 = arith.constant 0 : i32
    %c0_i32_0 = arith.constant 0 : i32
    %c0_i32_1 = arith.constant 0 : i32
    return %c0_i32, %c0_i32_0 : i32, i32
  }
  func.func @transform_5(%arg0: i32) -> (i32, i32) {
    %c0_i32 = arith.constant 0 : i32
    %c0_i32_0 = arith.constant 0 : i32
    %c0_i32_1 = arith.constant 0 : i32
    return %c0_i32, %c0_i32_0 : i32, i32
  }
  func.func @transform_6(%arg0: i32) -> (i32, i32) {
    %c0_i32 = arith.constant 0 : i32
    %c0_i32_0 = arith.constant 0 : i32
    %c0_i32_1 = arith.constant 0 : i32
    return %c0_i32, %c0_i32_0 : i32, i32
  }
  func.func @transform_7(%arg0: i32) -> (i32, i32) {
    %c0_i32 = arith.constant 0 : i32
    %c0_i32_0 = arith.constant 0 : i32
    %c0_i32_1 = arith.constant 0 : i32
    return %c0_i32, %c0_i32_0 : i32, i32
  }
  func.func @transform_8(%arg0: i32) -> (i32, i32) {
    %c0_i32 = arith.constant 0 : i32
    %c0_i32_0 = arith.constant 0 : i32
    %c0_i32_1 = arith.constant 0 : i32
    return %c0_i32, %c0_i32_0 : i32, i32
  }
  func.func @transform_9(%arg0: i32) -> (i32, i32) {
    %c0_i32 = arith.constant 0 : i32
    %c0_i32_0 = arith.constant 0 : i32
    return %arg0, %c0_i32 : i32, i32
  }
}

</mosaic_0001>

<llo_original>
// kernel: gpnet1_1_2_forward.1
$region0: #{gpnet1_1_2_forward.1}
  #allocation0 [shape = 'u32[]', space=smem, size = 0x4, offset = 0x4, fixed_abs, tag = 'smem constant byte address 0x4 - core index']
  #allocation1 [shape = 'u32[144,128]{1,0:T(1,128)}', space=vmem, size = 0x12000, scoped, tag = 'internal scratch']
  %s0 = inlined_call_operand.vmem [shape: f32[104,8], index: 0, kind: input, shape index: {}]
  %s1 = inlined_call_operand.vmem [shape: f32[8,128], index: 1, kind: input, shape index: {}]
  %s2 = inlined_call_operand.vmem [shape: f32[1,128], index: 2, kind: input, shape index: {}]
  %s3 = inlined_call_operand.vmem [shape: f32[128,128], index: 3, kind: input, shape index: {}]
  %s4 = inlined_call_operand.vmem [shape: f32[1,128], index: 4, kind: input, shape index: {}]
  %s5 = inlined_call_operand.vmem [shape: f32[128,128], index: 5, kind: input, shape index: {}]
  %s6 = inlined_call_operand.vmem [shape: f32[1,128], index: 6, kind: input, shape index: {}]
  %s7 = inlined_call_operand.vmem [shape: f32[128,8], index: 7, kind: input, shape index: {}]
  %s8 = inlined_call_operand.vmem [shape: f32[1,8], index: 8, kind: input, shape index: {}]
  %s9 = inlined_call_operand.vmem [shape: f32[104,8], index: 9, kind: output, shape index: {}]
  %s10 = sld [smem:[#allocation0]]
  $region46: #{gpnet1_1_2_forward.1} parent=0
    _
  %s12 = ssub.s32 1, %s10
  %s13 = scalar_select 0, %s12, %s10
  // Predicated region
  $region2: #{gpnet1_1_2_forward.1} parent=0 // pred_check
    _
  $region3: #{gpnet1_1_2_forward.1} parent=0 // pred_check_branch
    %15 = sbr.rel (0) target = $region5
  $region4: #{gpnet1_1_2_forward.1} parent=0 // pred_region
    _
  $region5: #{gpnet1_1_2_forward.1} parent=0 // pred_fallthru
    _
  // Predicated region
  $region6: #{gpnet1_1_2_forward.1} parent=0 // pred_check
    _
  $region7: #{gpnet1_1_2_forward.1} parent=0 // pred_check_branch
    %17 = sbr.rel (0) target = $region9
  $region8: #{gpnet1_1_2_forward.1} parent=0 // pred_region
    _
  $region9: #{gpnet1_1_2_forward.1} parent=0 // pred_fallthru
    _
  // Predicated region
  $region10: #{gpnet1_1_2_forward.1} parent=0 // pred_check
    _
  $region11: #{gpnet1_1_2_forward.1} parent=0 // pred_check_branch
    %19 = sbr.rel (0) target = $region13
  $region12: #{gpnet1_1_2_forward.1} parent=0 // pred_region
    _
  $region13: #{gpnet1_1_2_forward.1} parent=0 // pred_fallthru
    _
  // Predicated region
  $region14: #{gpnet1_1_2_forward.1} parent=0 // pred_check
    _
  $region15: #{gpnet1_1_2_forward.1} parent=0 // pred_check_branch
    %21 = sbr.rel (0) target = $region17
  $region16: #{gpnet1_1_2_forward.1} parent=0 // pred_region
    _
  $region17: #{gpnet1_1_2_forward.1} parent=0 // pred_fallthru
    _
  // Predicated region
  $region18: #{gpnet1_1_2_forward.1} parent=0 // pred_check
    _
  $region19: #{gpnet1_1_2_forward.1} parent=0 // pred_check_branch
    %23 = sbr.rel (0) target = $region21
  $region20: #{gpnet1_1_2_forward.1} parent=0 // pred_region
    _
  $region21: #{gpnet1_1_2_forward.1} parent=0 // pred_fallthru
    _
  // Predicated region
  $region22: #{gpnet1_1_2_forward.1} parent=0 // pred_check
    _
  $region23: #{gpnet1_1_2_forward.1} parent=0 // pred_check_branch
    %25 = sbr.rel (0) target = $region25
  $region24: #{gpnet1_1_2_forward.1} parent=0 // pred_region
    _
  $region25: #{gpnet1_1_2_forward.1} parent=0 // pred_fallthru
    _
  // Predicated region
  $region26: #{gpnet1_1_2_forward.1} parent=0 // pred_check
    _
  $region27: #{gpnet1_1_2_forward.1} parent=0 // pred_check_branch
    %27 = sbr.rel (0) target = $region29
  $region28: #{gpnet1_1_2_forward.1} parent=0 // pred_region
    _
  $region29: #{gpnet1_1_2_forward.1} parent=0 // pred_fallthru
    _
  // Predicated region
  $region30: #{gpnet1_1_2_forward.1} parent=0 // pred_check
    _
  $region31: #{gpnet1_1_2_forward.1} parent=0 // pred_check_branch
    %29 = sbr.rel (0) target = $region33
  $region32: #{gpnet1_1_2_forward.1} parent=0 // pred_region
    _
  $region33: #{gpnet1_1_2_forward.1} parent=0 // pred_fallthru
    _
  // Predicated region
  $region34: #{gpnet1_1_2_forward.1} parent=0 // pred_check
    _
  $region35: #{gpnet1_1_2_forward.1} parent=0 // pred_check_branch
    %31 = sbr.rel (0) target = $region37
  $region36: #{gpnet1_1_2_forward.1} parent=0 // pred_region
    _
  $region37: #{gpnet1_1_2_forward.1} parent=0 // pred_fallthru
    _
  %v32 = vld [vmem:[%s0] sm:$0xff]
  %v33 = vld [vmem:[%s0 + $0x8] sm:$0xff]
  %v34 = vld [vmem:[%s0 + $0x10] sm:$0xff]
  %v35 = vld [vmem:[%s0 + $0x18] sm:$0xff]
  %v36 = vld [vmem:[%s0 + $0x20] sm:$0xff]
  %v37 = vld [vmem:[%s0 + $0x28] sm:$0xff]
  %v38 = vld [vmem:[%s0 + $0x30] sm:$0xff]
  %v39 = vld [vmem:[%s0 + $0x38] sm:$0xff]
  %v40 = vld [vmem:[%s0 + $0x40] sm:$0xff]
  %v41 = vld [vmem:[%s0 + $0x48] sm:$0xff]
  %v42 = vld [vmem:[%s0 + $0x50] sm:$0xff]
  %v43 = vld [vmem:[%s0 + $0x58] sm:$0xff]
  %v44 = vld [vmem:[%s0 + $0x60] sm:$0xff]
  %v45 = vld [vmem:[%s1] sm:$0xff]
  %v46 = vld [vmem:[%s2] sm:$0x1]
  %v48 = vlaneseq
  %v49 = vshrl.u32 %v48, 7
  %v50 = vsub.s32 0, %v49
  %v51 = vrot.slane %v46, %v50
  %vm53 = vcmask 64512
  %v55 = vsel %vm53, %v32, 0
  %v58 = vsel %vm53, %v33, 0
  %v61 = vsel %vm53, %v34, 0
  %v64 = vsel %vm53, %v35, 0
  %v67 = vsel %vm53, %v36, 0
  %v70 = vsel %vm53, %v37, 0
  %v73 = vsel %vm53, %v38, 0
  %v76 = vsel %vm53, %v39, 0
  %v79 = vsel %vm53, %v40, 0
  %v82 = vsel %vm53, %v41, 0
  %v85 = vsel %vm53, %v42, 0
  %v88 = vsel %vm53, %v43, 0
  %v91 = vsel %vm53, %v44, 0
  %93 = vmatprep.subr.mxu0 0.0
  %94 = vmatpush1.msra.mxu0 0.0
  %95 = vmatprep.subr.mxu0 0.0
  %96 = vmatpush1.msra.mxu0 0.0
  %97 = vmatprep.subr.mxu0 0.0
  %98 = vmatpush1.msra.mxu0 0.0
  %99 = vmatprep.subr.mxu0 0.0
  %100 = vmatpush1.msra.mxu0 0.0
  %101 = vmatprep.subr.mxu0 0.0
  %102 = vmatpush1.msra.mxu0 0.0
  %103 = vmatprep.subr.mxu0 0.0
  %104 = vmatpush1.msra.mxu0 0.0
  %105 = vmatprep.subr.mxu0 0.0
  %106 = vmatpush1.msra.mxu0 0.0
  %107 = vmatprep.subr.mxu0 0.0
  %108 = vmatpush1.msra.mxu0 0.0
  %109 = vmatprep.subr.mxu0 0.0
  %110 = vmatpush1.msra.mxu0 0.0
  %111 = vmatprep.subr.mxu0 0.0
  %112 = vmatpush1.msra.mxu0 0.0
  %113 = vmatprep.subr.mxu0 0.0
  %114 = vmatpush1.msra.mxu0 0.0
  %115 = vmatprep.subr.mxu0 0.0
  %116 = vmatpush1.msra.mxu0 0.0
  %117 = vmatprep.subr.mxu0 0.0
  %118 = vmatpush1.msra.mxu0 0.0
  %119 = vmatprep.subr.mxu0 0.0
  %120 = vmatpush1.msra.mxu0 0.0
  %121 = vmatprep.subr.mxu0 0.0
  %122 = vmatpush1.msra.mxu0 0.0
  %123 = vmatprep.subr.mxu0 0.0
  %124 = vmatpush1.msra.mxu0 %v45
  %125 = vmatprep.subr.mxu0 0.0
  %126 = vmatpush2.msra.mxu0 0.0
  %127 = vmatprep.subr.mxu0 0.0
  %128 = vmatpush2.msra.mxu0 0.0
  %129 = vmatprep.subr.mxu0 0.0
  %130 = vmatpush2.msra.mxu0 0.0
  %131 = vmatprep.subr.mxu0 0.0
  %132 = vmatpush2.msra.mxu0 0.0
  %133 = vmatprep.subr.mxu0 0.0
  %134 = vmatpush2.msra.mxu0 0.0
  %135 = vmatprep.subr.mxu0 0.0
  %136 = vmatpush2.msra.mxu0 0.0
  %137 = vmatprep.subr.mxu0 0.0
  %138 = vmatpush2.msra.mxu0 0.0
  %139 = vmatprep.subr.mxu0 0.0
  %140 = vmatpush2.msra.mxu0 0.0
  %141 = vmatprep.subr.mxu0 0.0
  %142 = vmatpush2.msra.mxu0 0.0
  %143 = vmatprep.subr.mxu0 0.0
  %144 = vmatpush2.msra.mxu0 0.0
  %145 = vmatprep.subr.mxu0 0.0
  %146 = vmatpush2.msra.mxu0 0.0
  %147 = vmatprep.subr.mxu0 0.0
  %148 = vmatpush2.msra.mxu0 0.0
  %149 = vmatprep.subr.mxu0 0.0
  %150 = vmatpush2.msra.mxu0 0.0
  %151 = vmatprep.subr.mxu0 0.0
  %152 = vmatpush2.msra.mxu0 0.0
  %153 = vmatprep.subr.mxu0 0.0
  %154 = vmatpush2.msra.mxu0 0.0
  %155 = vmatprep.subr.mxu0 0.0
  %156 = vmatpush2.msra.mxu0 0.0
  %157 = vmatprep.mubr.f32.mxu0 0.0
  %158 = vmatmul.mubr.f32.gmra.mxu0 %v55
  %v159 = vpop.f32.mrf.mxu0
  %v160 = vadd.f32 %v51, %v159
  %v161 = vpop.f32.mrf.mxu0
  %162 = vmatprep.mubr.f32.mxu0 0.0
  %163 = vmatmul.mubr.f32.gmra.mxu0 %v58
  %v164 = vpop.f32.mrf.mxu0
  %v165 = vadd.f32 %v51, %v164
  %v166 = vpop.f32.mrf.mxu0
  %167 = vmatprep.mubr.f32.mxu0 0.0
  %168 = vmatmul.mubr.f32.gmra.mxu0 %v61
  %v169 = vpop.f32.mrf.mxu0
  %v170 = vadd.f32 %v51, %v169
  %v171 = vpop.f32.mrf.mxu0
  %172 = vmatprep.mubr.f32.mxu0 0.0
  %173 = vmatmul.mubr.f32.gmra.mxu0 %v64
  %v174 = vpop.f32.mrf.mxu0
  %v175 = vadd.f32 %v51, %v174
  %v176 = vpop.f32.mrf.mxu0
  %177 = vmatprep.mubr.f32.mxu0 0.0
  %178 = vmatmul.mubr.f32.gmra.mxu0 %v67
  %v179 = vpop.f32.mrf.mxu0
  %v180 = vadd.f32 %v51, %v179
  %v181 = vpop.f32.mrf.mxu0
  %182 = vmatprep.mubr.f32.mxu0 0.0
  %183 = vmatmul.mubr.f32.gmra.mxu0 %v70
  %v184 = vpop.f32.mrf.mxu0
  %v185 = vadd.f32 %v51, %v184
  %v186 = vpop.f32.mrf.mxu0
  %187 = vmatprep.mubr.f32.mxu0 0.0
  %188 = vmatmul.mubr.f32.gmra.mxu0 %v73
  %v189 = vpop.f32.mrf.mxu0
  %v190 = vadd.f32 %v51, %v189
  %v191 = vpop.f32.mrf.mxu0
  %192 = vmatprep.mubr.f32.mxu0 0.0
  %193 = vmatmul.mubr.f32.gmra.mxu0 %v76
  %v194 = vpop.f32.mrf.mxu0
  %v195 = vadd.f32 %v51, %v194
  %v196 = vpop.f32.mrf.mxu0
  %197 = vmatprep.mubr.f32.mxu0 0.0
  %198 = vmatmul.mubr.f32.gmra.mxu0 %v79
  %v199 = vpop.f32.mrf.mxu0
  %v200 = vadd.f32 %v51, %v199
  %v201 = vpop.f32.mrf.mxu0
  %202 = vmatprep.mubr.f32.mxu0 0.0
  %203 = vmatmul.mubr.f32.gmra.mxu0 %v82
  %v204 = vpop.f32.mrf.mxu0
  %v205 = vadd.f32 %v51, %v204
  %v206 = vpop.f32.mrf.mxu0
  %207 = vmatprep.mubr.f32.mxu0 0.0
  %208 = vmatmul.mubr.f32.gmra.mxu0 %v85
  %v209 = vpop.f32.mrf.mxu0
  %v210 = vadd.f32 %v51, %v209
  %v211 = vpop.f32.mrf.mxu0
  %212 = vmatprep.mubr.f32.mxu0 0.0
  %213 = vmatmul.mubr.f32.gmra.mxu0 %v88
  %v214 = vpop.f32.mrf.mxu0
  %v215 = vadd.f32 %v51, %v214
  %v216 = vpop.f32.mrf.mxu0
  %217 = vmatprep.mubr.f32.mxu0 0.0
  %218 = vmatmul.mubr.f32.gmra.mxu0 %v91
  %v219 = vpop.f32.mrf.mxu0
  %v220 = vadd.f32 %v51, %v219
  %v221 = vpop.f32.mrf.mxu0
  %222 = vdwg.mxu0
  %v223 = vtanh.pop %v160
  %v224 = vtanh.pop %v165
  %v225 = vtanh.pop %v170
  %v226 = vtanh.pop %v175
  %v227 = vtanh.pop %v180
  %v228 = vtanh.pop %v185
  %v229 = vtanh.pop %v190
  %v230 = vtanh.pop %v195
  %v231 = vtanh.pop %v200
  %v232 = vtanh.pop %v205
  %v233 = vtanh.pop %v210
  %v234 = vtanh.pop %v215
  %v235 = vtanh.pop %v220
  %v236 = vld [vmem:[%s3] sm:$0xff]
  %v237 = vld [vmem:[%s3 + $0x8] sm:$0xff]
  %v238 = vld [vmem:[%s3 + $0x10] sm:$0xff]
  %v239 = vld [vmem:[%s3 + $0x18] sm:$0xff]
  %v240 = vld [vmem:[%s3 + $0x20] sm:$0xff]
  %v241 = vld [vmem:[%s3 + $0x28] sm:$0xff]
  %v242 = vld [vmem:[%s3 + $0x30] sm:$0xff]
  %v243 = vld [vmem:[%s3 + $0x38] sm:$0xff]
  %v244 = vld [vmem:[%s3 + $0x40] sm:$0xff]
  %v245 = vld [vmem:[%s3 + $0x48] sm:$0xff]
  %v246 = vld [vmem:[%s3 + $0x50] sm:$0xff]
  %v247 = vld [vmem:[%s3 + $0x58] sm:$0xff]
  %v248 = vld [vmem:[%s3 + $0x60] sm:$0xff]
  %v249 = vld [vmem:[%s3 + $0x68] sm:$0xff]
  %v250 = vld [vmem:[%s3 + $0x70] sm:$0xff]
  %v251 = vld [vmem:[%s3 + $0x78] sm:$0xff]
  %v252 = vld [vmem:[%s4] sm:$0x1]
  %v254 = vlaneseq
  %v255 = vshrl.u32 %v254, 7
  %v256 = vsub.s32 0, %v255
  %v257 = vrot.slane %v252, %v256
  %259 = vmatprep.subr.mxu0 0.0
  %260 = vmatpush1.msra.mxu0 %v251
  %261 = vmatprep.subr.mxu0 0.0
  %262 = vmatpush1.msra.mxu0 %v250
  %263 = vmatprep.subr.mxu0 0.0
  %264 = vmatpush1.msra.mxu0 %v249
  %265 = vmatprep.subr.mxu0 0.0
  %266 = vmatpush1.msra.mxu0 %v248
  %267 = vmatprep.subr.mxu0 0.0
  %268 = vmatpush1.msra.mxu0 %v247
  %269 = vmatprep.subr.mxu0 0.0
  %270 = vmatpush1.msra.mxu0 %v246
  %271 = vmatprep.subr.mxu0 0.0
  %272 = vmatpush1.msra.mxu0 %v245
  %273 = vmatprep.subr.mxu0 0.0
  %274 = vmatpush1.msra.mxu0 %v244
  %275 = vmatprep.subr.mxu0 0.0
  %276 = vmatpush1.msra.mxu0 %v243
  %277 = vmatprep.subr.mxu0 0.0
  %278 = vmatpush1.msra.mxu0 %v242
  %279 = vmatprep.subr.mxu0 0.0
  %280 = vmatpush1.msra.mxu0 %v241
  %281 = vmatprep.subr.mxu0 0.0
  %282 = vmatpush1.msra.mxu0 %v240
  %283 = vmatprep.subr.mxu0 0.0
  %284 = vmatpush1.msra.mxu0 %v239
  %285 = vmatprep.subr.mxu0 0.0
  %286 = vmatpush1.msra.mxu0 %v238
  %287 = vmatprep.subr.mxu0 0.0
  %288 = vmatpush1.msra.mxu0 %v237
  %289 = vmatprep.subr.mxu0 0.0
  %290 = vmatpush1.msra.mxu0 %v236
  %291 = vmatprep.subr.mxu0 0.0
  %292 = vmatpush2.msra.mxu0 0.0
  %293 = vmatprep.subr.mxu0 0.0
  %294 = vmatpush2.msra.mxu0 0.0
  %295 = vmatprep.subr.mxu0 0.0
  %296 = vmatpush2.msra.mxu0 0.0
  %297 = vmatprep.subr.mxu0 0.0
  %298 = vmatpush2.msra.mxu0 0.0
  %299 = vmatprep.subr.mxu0 0.0
  %300 = vmatpush2.msra.mxu0 0.0
  %301 = vmatprep.subr.mxu0 0.0
  %302 = vmatpush2.msra.mxu0 0.0
  %303 = vmatprep.subr.mxu0 0.0
  %304 = vmatpush2.msra.mxu0 0.0
  %305 = vmatprep.subr.mxu0 0.0
  %306 = vmatpush2.msra.mxu0 0.0
  %307 = vmatprep.subr.mxu0 0.0
  %308 = vmatpush2.msra.mxu0 0.0
  %309 = vmatprep.subr.mxu0 0.0
  %310 = vmatpush2.msra.mxu0 0.0
  %311 = vmatprep.subr.mxu0 0.0
  %312 = vmatpush2.msra.mxu0 0.0
  %313 = vmatprep.subr.mxu0 0.0
  %314 = vmatpush2.msra.mxu0 0.0
  %315 = vmatprep.subr.mxu0 0.0
  %316 = vmatpush2.msra.mxu0 0.0
  %317 = vmatprep.subr.mxu0 0.0
  %318 = vmatpush2.msra.mxu0 0.0
  %319 = vmatprep.subr.mxu0 0.0
  %320 = vmatpush2.msra.mxu0 0.0
  %321 = vmatprep.subr.mxu0 0.0
  %322 = vmatpush2.msra.mxu0 0.0
  %323 = vmatprep.mubr.f32.mxu0 0.0
  %324 = vmatmul.mubr.f32.gmra.mxu0 %v223
  %v325 = vpop.f32.mrf.mxu0
  %v326 = vadd.f32 %v257, %v325
  %v327 = vpop.f32.mrf.mxu0
  %328 = vmatprep.mubr.f32.mxu0 0.0
  %329 = vmatmul.mubr.f32.gmra.mxu0 %v224
  %v330 = vpop.f32.mrf.mxu0
  %v331 = vadd.f32 %v257, %v330
  %v332 = vpop.f32.mrf.mxu0
  %333 = vmatprep.mubr.f32.mxu0 0.0
  %334 = vmatmul.mubr.f32.gmra.mxu0 %v225
  %v335 = vpop.f32.mrf.mxu0
  %v336 = vadd.f32 %v257, %v335
  %v337 = vpop.f32.mrf.mxu0
  %338 = vmatprep.mubr.f32.mxu0 0.0
  %339 = vmatmul.mubr.f32.gmra.mxu0 %v226
  %v340 = vpop.f32.mrf.mxu0
  %v341 = vadd.f32 %v257, %v340
  %v342 = vpop.f32.mrf.mxu0
  %343 = vmatprep.mubr.f32.mxu0 0.0
  %344 = vmatmul.mubr.f32.gmra.mxu0 %v227
  %v345 = vpop.f32.mrf.mxu0
  %v346 = vadd.f32 %v257, %v345
  %v347 = vpop.f32.mrf.mxu0
  %348 = vmatprep.mubr.f32.mxu0 0.0
  %349 = vmatmul.mubr.f32.gmra.mxu0 %v228
  %v350 = vpop.f32.mrf.mxu0
  %v351 = vadd.f32 %v257, %v350
  %v352 = vpop.f32.mrf.mxu0
  %353 = vmatprep.mubr.f32.mxu0 0.0
  %354 = vmatmul.mubr.f32.gmra.mxu0 %v229
  %v355 = vpop.f32.mrf.mxu0
  %v356 = vadd.f32 %v257, %v355
  %v357 = vpop.f32.mrf.mxu0
  %358 = vmatprep.mubr.f32.mxu0 0.0
  %359 = vmatmul.mubr.f32.gmra.mxu0 %v230
  %v360 = vpop.f32.mrf.mxu0
  %v361 = vadd.f32 %v257, %v360
  %v362 = vpop.f32.mrf.mxu0
  %363 = vmatprep.mubr.f32.mxu0 0.0
  %364 = vmatmul.mubr.f32.gmra.mxu0 %v231
  %v365 = vpop.f32.mrf.mxu0
  %v366 = vadd.f32 %v257, %v365
  %v367 = vpop.f32.mrf.mxu0
  %368 = vmatprep.mubr.f32.mxu0 0.0
  %369 = vmatmul.mubr.f32.gmra.mxu0 %v232
  %v370 = vpop.f32.mrf.mxu0
  %v371 = vadd.f32 %v257, %v370
  %v372 = vpop.f32.mrf.mxu0
  %373 = vmatprep.mubr.f32.mxu0 0.0
  %374 = vmatmul.mubr.f32.gmra.mxu0 %v233
  %v375 = vpop.f32.mrf.mxu0
  %v376 = vadd.f32 %v257, %v375
  %v377 = vpop.f32.mrf.mxu0
  %378 = vmatprep.mubr.f32.mxu0 0.0
  %379 = vmatmul.mubr.f32.gmra.mxu0 %v234
  %v380 = vpop.f32.mrf.mxu0
  %v381 = vadd.f32 %v257, %v380
  %v382 = vpop.f32.mrf.mxu0
  %383 = vmatprep.mubr.f32.mxu0 0.0
  %384 = vmatmul.mubr.f32.gmra.mxu0 %v235
  %v385 = vpop.f32.mrf.mxu0
  %v386 = vadd.f32 %v257, %v385
  %v387 = vpop.f32.mrf.mxu0
  %388 = vdwg.mxu0
  %v389 = vtanh.pop %v326
  %v390 = vtanh.pop %v331
  %v391 = vtanh.pop %v336
  %v392 = vtanh.pop %v341
  %v393 = vtanh.pop %v346
  %v394 = vtanh.pop %v351
  %v395 = vtanh.pop %v356
  %v396 = vtanh.pop %v361
  %v397 = vtanh.pop %v366
  %v398 = vtanh.pop %v371
  %v399 = vtanh.pop %v376
  %v400 = vtanh.pop %v381
  %v401 = vtanh.pop %v386
  %v402 = vld [vmem:[%s5] sm:$0xff]
  %v403 = vld [vmem:[%s5 + $0x8] sm:$0xff]
  %v404 = vld [vmem:[%s5 + $0x10] sm:$0xff]
  %v405 = vld [vmem:[%s5 + $0x18] sm:$0xff]
  %v406 = vld [vmem:[%s5 + $0x20] sm:$0xff]
  %v407 = vld [vmem:[%s5 + $0x28] sm:$0xff]
  %v408 = vld [vmem:[%s5 + $0x30] sm:$0xff]
  %v409 = vld [vmem:[%s5 + $0x38] sm:$0xff]
  %v410 = vld [vmem:[%s5 + $0x40] sm:$0xff]
  %v411 = vld [vmem:[%s5 + $0x48] sm:$0xff]
  %v412 = vld [vmem:[%s5 + $0x50] sm:$0xff]
  %v413 = vld [vmem:[%s5 + $0x58] sm:$0xff]
  %v414 = vld [vmem:[%s5 + $0x60] sm:$0xff]
  %v415 = vld [vmem:[%s5 + $0x68] sm:$0xff]
  %v416 = vld [vmem:[%s5 + $0x70] sm:$0xff]
  %v417 = vld [vmem:[%s5 + $0x78] sm:$0xff]
  %v418 = vld [vmem:[%s6] sm:$0x1]
  %v420 = vlaneseq
  %v421 = vshrl.u32 %v420, 7
  %v422 = vsub.s32 0, %v421
  %v423 = vrot.slane %v418, %v422
  %425 = vmatprep.subr.mxu0 0.0
  %426 = vmatpush1.msra.mxu0 %v417
  %427 = vmatprep.subr.mxu0 0.0
  %428 = vmatpush1.msra.mxu0 %v416
  %429 = vmatprep.subr.mxu0 0.0
  %430 = vmatpush1.msra.mxu0 %v415
  %431 = vmatprep.subr.mxu0 0.0
  %432 = vmatpush1.msra.mxu0 %v414
  %433 = vmatprep.subr.mxu0 0.0
  %434 = vmatpush1.msra.mxu0 %v413
  %435 = vmatprep.subr.mxu0 0.0
  %436 = vmatpush1.msra.mxu0 %v412
  %437 = vmatprep.subr.mxu0 0.0
  %438 = vmatpush1.msra.mxu0 %v411
  %439 = vmatprep.subr.mxu0 0.0
  %440 = vmatpush1.msra.mxu0 %v410
  %441 = vmatprep.subr.mxu0 0.0
  %442 = vmatpush1.msra.mxu0 %v409
  %443 = vmatprep.subr.mxu0 0.0
  %444 = vmatpush1.msra.mxu0 %v408
  %445 = vmatprep.subr.mxu0 0.0
  %446 = vmatpush1.msra.mxu0 %v407
  %447 = vmatprep.subr.mxu0 0.0
  %448 = vmatpush1.msra.mxu0 %v406
  %449 = vmatprep.subr.mxu0 0.0
  %450 = vmatpush1.msra.mxu0 %v405
  %451 = vmatprep.subr.mxu0 0.0
  %452 = vmatpush1.msra.mxu0 %v404
  %453 = vmatprep.subr.mxu0 0.0
  %454 = vmatpush1.msra.mxu0 %v403
  %455 = vmatprep.subr.mxu0 0.0
  %456 = vmatpush1.msra.mxu0 %v402
  %457 = vmatprep.subr.mxu0 0.0
  %458 = vmatpush2.msra.mxu0 0.0
  %459 = vmatprep.subr.mxu0 0.0
  %460 = vmatpush2.msra.mxu0 0.0
  %461 = vmatprep.subr.mxu0 0.0
  %462 = vmatpush2.msra.mxu0 0.0
  %463 = vmatprep.subr.mxu0 0.0
  %464 = vmatpush2.msra.mxu0 0.0
  %465 = vmatprep.subr.mxu0 0.0
  %466 = vmatpush2.msra.mxu0 0.0
  %467 = vmatprep.subr.mxu0 0.0
  %468 = vmatpush2.msra.mxu0 0.0
  %469 = vmatprep.subr.mxu0 0.0
  %470 = vmatpush2.msra.mxu0 0.0
  %471 = vmatprep.subr.mxu0 0.0
  %472 = vmatpush2.msra.mxu0 0.0
  %473 = vmatprep.subr.mxu0 0.0
  %474 = vmatpush2.msra.mxu0 0.0
  %475 = vmatprep.subr.mxu0 0.0
  %476 = vmatpush2.msra.mxu0 0.0
  %477 = vmatprep.subr.mxu0 0.0
  %478 = vmatpush2.msra.mxu0 0.0
  %479 = vmatprep.subr.mxu0 0.0
  %480 = vmatpush2.msra.mxu0 0.0
  %481 = vmatprep.subr.mxu0 0.0
  %482 = vmatpush2.msra.mxu0 0.0
  %483 = vmatprep.subr.mxu0 0.0
  %484 = vmatpush2.msra.mxu0 0.0
  %485 = vmatprep.subr.mxu0 0.0
  %486 = vmatpush2.msra.mxu0 0.0
  %487 = vmatprep.subr.mxu0 0.0
  %488 = vmatpush2.msra.mxu0 0.0
  %489 = vmatprep.mubr.f32.mxu0 0.0
  %490 = vmatmul.mubr.f32.gmra.mxu0 %v389
  %v491 = vpop.f32.mrf.mxu0
  %v492 = vadd.f32 %v423, %v491
  %v493 = vpop.f32.mrf.mxu0
  %494 = vmatprep.mubr.f32.mxu0 0.0
  %495 = vmatmul.mubr.f32.gmra.mxu0 %v390
  %v496 = vpop.f32.mrf.mxu0
  %v497 = vadd.f32 %v423, %v496
  %v498 = vpop.f32.mrf.mxu0
  %499 = vmatprep.mubr.f32.mxu0 0.0
  %500 = vmatmul.mubr.f32.gmra.mxu0 %v391
  %v501 = vpop.f32.mrf.mxu0
  %v502 = vadd.f32 %v423, %v501
  %v503 = vpop.f32.mrf.mxu0
  %504 = vmatprep.mubr.f32.mxu0 0.0
  %505 = vmatmul.mubr.f32.gmra.mxu0 %v392
  %v506 = vpop.f32.mrf.mxu0
  %v507 = vadd.f32 %v423, %v506
  %v508 = vpop.f32.mrf.mxu0
  %509 = vmatprep.mubr.f32.mxu0 0.0
  %510 = vmatmul.mubr.f32.gmra.mxu0 %v393
  %v511 = vpop.f32.mrf.mxu0
  %v512 = vadd.f32 %v423, %v511
  %v513 = vpop.f32.mrf.mxu0
  %514 = vmatprep.mubr.f32.mxu0 0.0
  %515 = vmatmul.mubr.f32.gmra.mxu0 %v394
  %v516 = vpop.f32.mrf.mxu0
  %v517 = vadd.f32 %v423, %v516
  %v518 = vpop.f32.mrf.mxu0
  %519 = vmatprep.mubr.f32.mxu0 0.0
  %520 = vmatmul.mubr.f32.gmra.mxu0 %v395
  %v521 = vpop.f32.mrf.mxu0
  %v522 = vadd.f32 %v423, %v521
  %v523 = vpop.f32.mrf.mxu0
  %524 = vmatprep.mubr.f32.mxu0 0.0
  %525 = vmatmul.mubr.f32.gmra.mxu0 %v396
  %v526 = vpop.f32.mrf.mxu0
  %v527 = vadd.f32 %v423, %v526
  %v528 = vpop.f32.mrf.mxu0
  %529 = vmatprep.mubr.f32.mxu0 0.0
  %530 = vmatmul.mubr.f32.gmra.mxu0 %v397
  %v531 = vpop.f32.mrf.mxu0
  %v532 = vadd.f32 %v423, %v531
  %v533 = vpop.f32.mrf.mxu0
  %534 = vmatprep.mubr.f32.mxu0 0.0
  %535 = vmatmul.mubr.f32.gmra.mxu0 %v398
  %v536 = vpop.f32.mrf.mxu0
  %v537 = vadd.f32 %v423, %v536
  %v538 = vpop.f32.mrf.mxu0
  %539 = vmatprep.mubr.f32.mxu0 0.0
  %540 = vmatmul.mubr.f32.gmra.mxu0 %v399
  %v541 = vpop.f32.mrf.mxu0
  %v542 = vadd.f32 %v423, %v541
  %v543 = vpop.f32.mrf.mxu0
  %544 = vmatprep.mubr.f32.mxu0 0.0
  %545 = vmatmul.mubr.f32.gmra.mxu0 %v400
  %v546 = vpop.f32.mrf.mxu0
  %v547 = vadd.f32 %v423, %v546
  %v548 = vpop.f32.mrf.mxu0
  %549 = vmatprep.mubr.f32.mxu0 0.0
  %550 = vmatmul.mubr.f32.gmra.mxu0 %v401
  %v551 = vpop.f32.mrf.mxu0
  %v552 = vadd.f32 %v423, %v551
  %v553 = vpop.f32.mrf.mxu0
  %554 = vdwg.mxu0
  %v555 = vtanh.pop %v492
  %v556 = vtanh.pop %v497
  %v557 = vtanh.pop %v502
  %v558 = vtanh.pop %v507
  %v559 = vtanh.pop %v512
  %v560 = vtanh.pop %v517
  %v561 = vtanh.pop %v522
  %v562 = vtanh.pop %v527
  %v563 = vtanh.pop %v532
  %v564 = vtanh.pop %v537
  %v565 = vtanh.pop %v542
  %v566 = vtanh.pop %v547
  %v567 = vtanh.pop %v552
  %v568 = vld [vmem:[%s7] sm:$0xff]
  %v569 = vld [vmem:[%s7 + $0x8] sm:$0xff]
  %v570 = vld [vmem:[%s7 + $0x10] sm:$0xff]
  %v571 = vld [vmem:[%s7 + $0x18] sm:$0xff]
  %v572 = vld [vmem:[%s7 + $0x20] sm:$0xff]
  %v573 = vld [vmem:[%s7 + $0x28] sm:$0xff]
  %v574 = vld [vmem:[%s7 + $0x30] sm:$0xff]
  %v575 = vld [vmem:[%s7 + $0x38] sm:$0xff]
  %v576 = vld [vmem:[%s7 + $0x40] sm:$0xff]
  %v577 = vld [vmem:[%s7 + $0x48] sm:$0xff]
  %v578 = vld [vmem:[%s7 + $0x50] sm:$0xff]
  %v579 = vld [vmem:[%s7 + $0x58] sm:$0xff]
  %v580 = vld [vmem:[%s7 + $0x60] sm:$0xff]
  %v581 = vld [vmem:[%s7 + $0x68] sm:$0xff]
  %v582 = vld [vmem:[%s7 + $0x70] sm:$0xff]
  %v583 = vld [vmem:[%s7 + $0x78] sm:$0xff]
  %v584 = vld [vmem:[%s8] sm:$0x1]
  %v586 = vlaneseq
  %v587 = vshrl.u32 %v586, 7
  %v588 = vsub.s32 0, %v587
  %v589 = vrot.slane %v584, %v588
  %591 = vmatprep.subr.mxu0 0.0
  %592 = vmatpush1.msra.mxu0 %v583
  %593 = vmatprep.subr.mxu0 0.0
  %594 = vmatpush1.msra.mxu0 %v582
  %595 = vmatprep.subr.mxu0 0.0
  %596 = vmatpush1.msra.mxu0 %v581
  %597 = vmatprep.subr.mxu0 0.0
  %598 = vmatpush1.msra.mxu0 %v580
  %599 = vmatprep.subr.mxu0 0.0
  %600 = vmatpush1.msra.mxu0 %v579
  %601 = vmatprep.subr.mxu0 0.0
  %602 = vmatpush1.msra.mxu0 %v578
  %603 = vmatprep.subr.mxu0 0.0
  %604 = vmatpush1.msra.mxu0 %v577
  %605 = vmatprep.subr.mxu0 0.0
  %606 = vmatpush1.msra.mxu0 %v576
  %607 = vmatprep.subr.mxu0 0.0
  %608 = vmatpush1.msra.mxu0 %v575
  %609 = vmatprep.subr.mxu0 0.0
  %610 = vmatpush1.msra.mxu0 %v574
  %611 = vmatprep.subr.mxu0 0.0
  %612 = vmatpush1.msra.mxu0 %v573
  %613 = vmatprep.subr.mxu0 0.0
  %614 = vmatpush1.msra.mxu0 %v572
  %615 = vmatprep.subr.mxu0 0.0
  %616 = vmatpush1.msra.mxu0 %v571
  %617 = vmatprep.subr.mxu0 0.0
  %618 = vmatpush1.msra.mxu0 %v570
  %619 = vmatprep.subr.mxu0 0.0
  %620 = vmatpush1.msra.mxu0 %v569
  %621 = vmatprep.subr.mxu0 0.0
  %622 = vmatpush1.msra.mxu0 %v568
  %623 = vmatprep.subr.mxu0 0.0
  %624 = vmatpush2.msra.mxu0 0.0
  %625 = vmatprep.subr.mxu0 0.0
  %626 = vmatpush2.msra.mxu0 0.0
  %627 = vmatprep.subr.mxu0 0.0
  %628 = vmatpush2.msra.mxu0 0.0
  %629 = vmatprep.subr.mxu0 0.0
  %630 = vmatpush2.msra.mxu0 0.0
  %631 = vmatprep.subr.mxu0 0.0
  %632 = vmatpush2.msra.mxu0 0.0
  %633 = vmatprep.subr.mxu0 0.0
  %634 = vmatpush2.msra.mxu0 0.0
  %635 = vmatprep.subr.mxu0 0.0
  %636 = vmatpush2.msra.mxu0 0.0
  %637 = vmatprep.subr.mxu0 0.0
  %638 = vmatpush2.msra.mxu0 0.0
  %639 = vmatprep.subr.mxu0 0.0
  %640 = vmatpush2.msra.mxu0 0.0
  %641 = vmatprep.subr.mxu0 0.0
  %642 = vmatpush2.msra.mxu0 0.0
  %643 = vmatprep.subr.mxu0 0.0
  %644 = vmatpush2.msra.mxu0 0.0
  %645 = vmatprep.subr.mxu0 0.0
  %646 = vmatpush2.msra.mxu0 0.0
  %647 = vmatprep.subr.mxu0 0.0
  %648 = vmatpush2.msra.mxu0 0.0
  %649 = vmatprep.subr.mxu0 0.0
  %650 = vmatpush2.msra.mxu0 0.0
  %651 = vmatprep.subr.mxu0 0.0
  %652 = vmatpush2.msra.mxu0 0.0
  %653 = vmatprep.subr.mxu0 0.0
  %654 = vmatpush2.msra.mxu0 0.0
  %655 = vmatprep.mubr.f32.mxu0 0.0
  %656 = vmatmul.mubr.f32.gmra.mxu0 %v555
  %v657 = vpop.f32.mrf.mxu0
  %v658 = vadd.f32 %v589, %v657
  %v659 = vpop.f32.mrf.mxu0
  %660 = vmatprep.mubr.f32.mxu0 0.0
  %661 = vmatmul.mubr.f32.gmra.mxu0 %v556
  %v662 = vpop.f32.mrf.mxu0
  %v663 = vadd.f32 %v589, %v662
  %v664 = vpop.f32.mrf.mxu0
  %665 = vmatprep.mubr.f32.mxu0 0.0
  %666 = vmatmul.mubr.f32.gmra.mxu0 %v557
  %v667 = vpop.f32.mrf.mxu0
  %v668 = vadd.f32 %v589, %v667
  %v669 = vpop.f32.mrf.mxu0
  %670 = vmatprep.mubr.f32.mxu0 0.0
  %671 = vmatmul.mubr.f32.gmra.mxu0 %v558
  %v672 = vpop.f32.mrf.mxu0
  %v673 = vadd.f32 %v589, %v672
  %v674 = vpop.f32.mrf.mxu0
  %675 = vmatprep.mubr.f32.mxu0 0.0
  %676 = vmatmul.mubr.f32.gmra.mxu0 %v559
  %v677 = vpop.f32.mrf.mxu0
  %v678 = vadd.f32 %v589, %v677
  %v679 = vpop.f32.mrf.mxu0
  %680 = vmatprep.mubr.f32.mxu0 0.0
  %681 = vmatmul.mubr.f32.gmra.mxu0 %v560
  %v682 = vpop.f32.mrf.mxu0
  %v683 = vadd.f32 %v589, %v682
  %v684 = vpop.f32.mrf.mxu0
  %685 = vmatprep.mubr.f32.mxu0 0.0
  %686 = vmatmul.mubr.f32.gmra.mxu0 %v561
  %v687 = vpop.f32.mrf.mxu0
  %v688 = vadd.f32 %v589, %v687
  %v689 = vpop.f32.mrf.mxu0
  %690 = vmatprep.mubr.f32.mxu0 0.0
  %691 = vmatmul.mubr.f32.gmra.mxu0 %v562
  %v692 = vpop.f32.mrf.mxu0
  %v693 = vadd.f32 %v589, %v692
  %v694 = vpop.f32.mrf.mxu0
  %695 = vmatprep.mubr.f32.mxu0 0.0
  %696 = vmatmul.mubr.f32.gmra.mxu0 %v563
  %v697 = vpop.f32.mrf.mxu0
  %v698 = vadd.f32 %v589, %v697
  %v699 = vpop.f32.mrf.mxu0
  %700 = vmatprep.mubr.f32.mxu0 0.0
  %701 = vmatmul.mubr.f32.gmra.mxu0 %v564
  %v702 = vpop.f32.mrf.mxu0
  %v703 = vadd.f32 %v589, %v702
  %v704 = vpop.f32.mrf.mxu0
  %705 = vmatprep.mubr.f32.mxu0 0.0
  %706 = vmatmul.mubr.f32.gmra.mxu0 %v565
  %v707 = vpop.f32.mrf.mxu0
  %v708 = vadd.f32 %v589, %v707
  %v709 = vpop.f32.mrf.mxu0
  %710 = vmatprep.mubr.f32.mxu0 0.0
  %711 = vmatmul.mubr.f32.gmra.mxu0 %v566
  %v712 = vpop.f32.mrf.mxu0
  %v713 = vadd.f32 %v589, %v712
  %v714 = vpop.f32.mrf.mxu0
  %715 = vmatprep.mubr.f32.mxu0 0.0
  %716 = vmatmul.mubr.f32.gmra.mxu0 %v567
  %v717 = vpop.f32.mrf.mxu0
  %v718 = vadd.f32 %v589, %v717
  %v719 = vpop.f32.mrf.mxu0
  %720 = vdwg.mxu0
  %721 = vst.msk [vmem:[%s9] sm:$0xff] %vm53, %v658
  %722 = vst.msk [vmem:[%s9 + $0x8] sm:$0xff] %vm53, %v663
  %723 = vst.msk [vmem:[%s9 + $0x10] sm:$0xff] %vm53, %v668
  %724 = vst.msk [vmem:[%s9 + $0x18] sm:$0xff] %vm53, %v673
  %725 = vst.msk [vmem:[%s9 + $0x20] sm:$0xff] %vm53, %v678
  %726 = vst.msk [vmem:[%s9 + $0x28] sm:$0xff] %vm53, %v683
  %727 = vst.msk [vmem:[%s9 + $0x30] sm:$0xff] %vm53, %v688
  %728 = vst.msk [vmem:[%s9 + $0x38] sm:$0xff] %vm53, %v693
  %729 = vst.msk [vmem:[%s9 + $0x40] sm:$0xff] %vm53, %v698
  %730 = vst.msk [vmem:[%s9 + $0x48] sm:$0xff] %vm53, %v703
  %731 = vst.msk [vmem:[%s9 + $0x50] sm:$0xff] %vm53, %v708
  %732 = vst.msk [vmem:[%s9 + $0x58] sm:$0xff] %vm53, %v713
  %733 = vst.msk [vmem:[%s9 + $0x60] sm:$0xff] %vm53, %v718
  // Predicated region
  $region38: #{gpnet1_1_2_forward.1} parent=0 // pred_check
    _
  $region39: #{gpnet1_1_2_forward.1} parent=0 // pred_check_branch
    %735 = sbr.rel (0) target = $region41
  $region40: #{gpnet1_1_2_forward.1} parent=0 // pred_region
    _
  $region41: #{gpnet1_1_2_forward.1} parent=0 // pred_fallthru
    _
  // Predicated region
  $region42: #{gpnet1_1_2_forward.1} parent=0 // pred_check
    _
  $region43: #{gpnet1_1_2_forward.1} parent=0 // pred_check_branch
    %737 = sbr.rel (0) target = $region45
  $region44: #{gpnet1_1_2_forward.1} parent=0 // pred_region
    _
  $region45: #{gpnet1_1_2_forward.1} parent=0 // pred_fallthru
    _

</llo_original>
